<compile_context>
chip_gen: v7x
topology: tpu7x:2x2x1
jax: 0.10.0
libtpu: 0.0.40
codegen_flags: <defaults>
</compile_context>

<pallas_src>
import functools

import jax
import jax.numpy as jnp
from jax import lax
from jax.experimental import pallas as pl
from jax.experimental.pallas import tpu as pltpu


# --------------------------- small integer helpers -------------------------- #
def _idiv_const(x, d):
    """floor(x / d) for a non-negative int32 array and a positive Python int."""
    if d == 1:
        return x
    if (d & (d - 1)) == 0:                       # power of two -> shift
        return jnp.right_shift(x, d.bit_length() - 1)
    # exact via f32: values here are < 2**20 and quotients are tiny
    return jnp.floor(x.astype(jnp.float32) / float(d)).astype(jnp.int32)


def _imod_const(x, d):
    if d == 1:
        return jnp.zeros_like(x)
    if (d & (d - 1)) == 0:
        return jnp.bitwise_and(x, d - 1)
    return x - _idiv_const(x, d) * d


# ----------------------------- Pallas kernel ------------------------------- #
def _decode_kernel(stride_ref, anch_ref, x_ref, o_ref, *, tm, ny, na, no):
    """yolov5 decode on a (tm, nx*no) tile of the (bs*na*ny, nx*no) slab.

    channel c = lane % no:
      c in {0,1}: (sigmoid(x)*2 - 0.5 + grid_xy) * stride
      c in {2,3}: (sigmoid(x)*2)**2 * anchor_wh
      c >= 4   : sigmoid(x)
    grid_x = lane // no (lane-only);  grid_y = row % ny and
    anchor index = (row // ny) % na (row-only) -> cheap broadcasts.
    """
    L = x_ref.shape[1]

    x = x_ref[...].astype(jnp.float32)
    sig = jax.nn.sigmoid(x)
    t2 = sig * 2.0

    # Lane-only quantities, shape (1, L): broadcast along sublanes.
    col = lax.broadcasted_iota(jnp.int32, (1, L), 1)
    c = _imod_const(col, no)
    gx = _idiv_const(col, no).astype(jnp.float32)

    # Row-only quantities, shape (tm, 1): broadcast along lanes.
    row = pl.program_id(0) * tm + lax.broadcasted_iota(jnp.int32, (tm, 1), 0)
    gy = _imod_const(row, ny).astype(jnp.float32)
    ai = _imod_const(_idiv_const(row, ny), na)

    stride = stride_ref[0]
    aw = anch_ref[na - 1, 0]
    ah = anch_ref[na - 1, 1]
    for a in range(na - 2, -1, -1):              # tiny where-chain over anchors
        sel = ai == a
        aw = jnp.where(sel, anch_ref[a, 0], aw)
        ah = jnp.where(sel, anch_ref[a, 1], ah)

    g = jnp.where(c == 0, gx, gy)                # grid_x (c==0) / grid_y (c==1)
    xy = (t2 - 0.5 + g) * stride
    anchor = jnp.where(c == 2, aw, ah)           # anchor_w (c==2) / anchor_h (c==3)
    wh = t2 * t2 * anchor
    out = jnp.where(c < 2, xy, jnp.where(c < 4, wh, sig))
    o_ref[...] = out.astype(o_ref.dtype)


def _pick_tm(rows, lane, itemsize=4, max_block_bytes=2 * 1024 * 1024):
    """Largest legal sublane tile: full extent if it fits ~2 MiB, else the
    largest divisor of `rows` that is a multiple of 8 under the byte cap."""
    cap = max(8, max_block_bytes // (lane * itemsize))
    if rows <= cap:
        return rows                              # full extent is always legal
    for d in range(min(cap, rows), 7, -1):
        if rows % d == 0 and d % 8 == 0:
            return d
    return rows                                  # fallback: one full-extent block


def _decode_level(x2d, stride_arr, anchors_lvl, *, ny, na, no):
    rows, L = x2d.shape
    tm = _pick_tm(rows, L)
    kernel = functools.partial(_decode_kernel, tm=tm, ny=ny, na=na, no=no)
    return pl.pallas_call(
        kernel,
        out_shape=jax.ShapeDtypeStruct((rows, L), jnp.float32),
        grid=(rows // tm,),
        in_specs=[
            pl.BlockSpec(memory_space=pltpu.MemorySpace.SMEM),   # stride  (1,)
            pl.BlockSpec(memory_space=pltpu.MemorySpace.SMEM),   # anchors (na, 2)
            pl.BlockSpec((tm, L), lambda i: (i, 0)),
        ],
        out_specs=pl.BlockSpec((tm, L), lambda i: (i, 0)),
        compiler_params=pltpu.CompilerParams(
            dimension_semantics=("parallel",)),
    )(stride_arr, anchors_lvl, x2d)


# ----------------------------- Detect forward ------------------------------ #
def make_grid(nx, ny):
    # matches Detect._make_grid: stack((xv, yv), 2) with 'ij' meshgrid
    gy, gx = jnp.meshgrid(jnp.arange(ny, dtype=jnp.float32),
                          jnp.arange(nx, dtype=jnp.float32), indexing="ij")
    return gx, gy


def detect_forward(xs, anchors, strides, nc):
    """Inference-mode Detect.forward. Returns (z_cat, x_permuted_list)."""
    no = nc + 5
    na = anchors.shape[1]
    z, x_out = [], []
    for i, xi in enumerate(xs):
        bs, _, ny, nx = xi.shape
        # glue: NCHW -> (bs, na, ny, nx, no), same as torch view+permute
        xp = xi.reshape(bs, na, no, ny, nx).transpose(0, 1, 3, 4, 2)
        x_out.append(xp)

        # lane-dense 2-D view: rows = (b, a, y), lanes = (x, channel)
        x2d = xp.reshape(bs * na * ny, nx * no)
        stride_arr = jnp.reshape(strides[i], (1,)).astype(jnp.float32)
        anchors_lvl = anchors[i].astype(jnp.float32)           # (na, 2)

        y2d = _decode_level(x2d, stride_arr, anchors_lvl, ny=ny, na=na, no=no)
        z.append(y2d.reshape(bs, na * ny * nx, no))
    return jnp.concatenate(z, axis=1), x_out


def detect_forward_ref(xs, anchors, strides, nc):
    """Pure-JAX reference (mirrors the PyTorch semantics exactly)."""
    no = nc + 5
    na = anchors.shape[1]
    z, x_out = [], []
    for i, xi in enumerate(xs):
        bs, _, ny, nx = xi.shape
        xp = xi.reshape(bs, na, no, ny, nx).transpose(0, 1, 3, 4, 2)
        x_out.append(xp)
        gx, gy = make_grid(nx, ny)
        grid = jnp.stack([gx, gy], axis=-1)[None, None]          # (1,1,ny,nx,2)
        anchor_grid = anchors[i].reshape(1, na, 1, 1, 2)         # (1,na,1,1,2)
        y = jax.nn.sigmoid(xp)
        xy = (y[..., 0:2] * 2.0 - 0.5 + grid) * strides[i]
        wh = (y[..., 2:4] * 2.0) ** 2 * anchor_grid
        y = jnp.concatenate([xy, wh, y[..., 4:]], axis=-1)
        z.append(y.reshape(bs, -1, no))
    return jnp.concatenate(z, axis=1), x_out


# --------------------------------- main ------------------------------------ #
if __name__ == "__main__":
    key = jax.random.PRNGKey(0)

    # Module configuration (deterministic, small).
    nc = 11                      # -> no = 16
    no = nc + 5
    anchors_list = [[10, 13, 16, 30, 33, 23],
                    [30, 61, 62, 45, 59, 119],
                    [116, 90, 156, 198, 373, 326]]
    nl = len(anchors_list)
    na = len(anchors_list[0]) // 2
    anchors = jnp.asarray(anchors_list, dtype=jnp.float32).reshape(nl, na, 2)
    strides = jnp.asarray([8.0, 16.0, 32.0], dtype=jnp.float32)

    # Three feature maps, NCHW, channels = na*no = 48.
    bs = 2
    spatial = [8, 4, 2]
    xs = []
    for s in spatial:
        key, k = jax.random.split(key)
        xs.append(jax.random.normal(k, (bs, na * no, s, s), dtype=jnp.float32))

    # jit-compiled (strides/anchors are traced -> exercises the SMEM path).
    detect_jit = jax.jit(detect_forward, static_argnames=("nc",))
    z, x_perm = detect_jit(xs, anchors, strides, nc=nc)
    z = jax.block_until_ready(z)
    x_perm = [jax.block_until_ready(t) for t in x_perm]

    # Verify against the pure-JAX reference.
    z_ref, x_ref = detect_forward_ref(xs, anchors, strides, nc)
    assert z.shape == (bs, na * sum(s * s for s in spatial), no)
    assert jnp.allclose(z, z_ref, atol=1e-5, rtol=1e-5)
    for a, b in zip(x_perm, x_ref):
        assert a.shape == b.shape and jnp.allclose(a, b, atol=1e-6)

    print("KERNEL_OK")
</pallas_src>

<mosaic_0001>
module attributes {stable_mosaic.version = 11 : i64} {
  func.func @_decode_kernel(%arg0: i32, %arg1: memref<1xf32, #tpu.memory_space<smem>>, %arg2: memref<3x2xf32, #tpu.memory_space<smem>>, %arg3: memref<48x128xf32, #tpu.memory_space<vmem>>, %arg4: memref<48x128xf32, #tpu.memory_space<vmem>>) attributes {dimension_semantics = [#tpu.dimension_semantics<parallel>], iteration_bounds = array<i64: 1>, scalar_prefetch = 0 : i64, scratch_operands = 0 : i64, tpu.core_type = #tpu.core_type<tc>, window_params = [{transform_indices = @transform_0, window_bounds = array<i64: 1>}, {transform_indices = @transform_1, window_bounds = array<i64: 3, 2>}, {transform_indices = @transform_2, window_bounds = array<i64: 48, 128>}, {transform_indices = @transform_3, window_bounds = array<i64: 48, 128>}]} {
    %c0 = arith.constant 0 : index
    %c0_0 = arith.constant 0 : index
    %0 = vector.load %arg3[%c0, %c0_0] : memref<48x128xf32, #tpu.memory_space<vmem>>, vector<48x128xf32>
    %1 = arith.negf %0 : vector<48x128xf32>
    %2 = math.exp %1 : vector<48x128xf32>
    %cst = arith.constant 1.000000e+00 : f32
    %3 = vector.broadcast %cst : f32 to vector<48x128xf32>
    %4 = arith.addf %3, %2 : vector<48x128xf32>
    %5 = arith.divf %3, %4 : vector<48x128xf32>
    %cst_1 = arith.constant 2.000000e+00 : f32
    %6 = vector.broadcast %cst_1 : f32 to vector<48x128xf32>
    %7 = arith.mulf %5, %6 : vector<48x128xf32>
    %8 = tpu.iota {dimensions = array<i32: 1>} : vector<1x128xi32>
    %c15_i32 = arith.constant 15 : i32
    %9 = vector.broadcast %c15_i32 : i32 to vector<1x128xi32>
    %10 = arith.andi %8, %9 : vector<1x128xi32>
    %c4_i32 = arith.constant 4 : i32
    %11 = vector.broadcast %c4_i32 : i32 to vector<1x128xi32>
    %12 = arith.shrsi %8, %11 : vector<1x128xi32>
    %13 = arith.sitofp %12 : vector<1x128xi32> to vector<1x128xf32>
    %c48_i32 = arith.constant 48 : i32
    %14 = arith.muli %arg0, %c48_i32 : i32
    %15 = tpu.iota {dimensions = array<i32: 0>} : vector<48x1xi32>
    %16 = vector.broadcast %14 : i32 to vector<48x1xi32>
    %17 = arith.addi %16, %15 : vector<48x1xi32>
    %c7_i32 = arith.constant 7 : i32
    %18 = vector.broadcast %c7_i32 : i32 to vector<48x1xi32>
    %19 = arith.andi %17, %18 : vector<48x1xi32>
    %20 = arith.sitofp %19 : vector<48x1xi32> to vector<48x1xf32>
    %c3_i32 = arith.constant 3 : i32
    %21 = vector.broadcast %c3_i32 : i32 to vector<48x1xi32>
    %22 = arith.shrsi %17, %21 : vector<48x1xi32>
    %23 = arith.sitofp %22 : vector<48x1xi32> to vector<48x1xf32>
    %cst_2 = arith.constant 3.000000e+00 : f32
    %24 = vector.broadcast %cst_2 : f32 to vector<48x1xf32>
    %25 = arith.divf %23, %24 : vector<48x1xf32>
    %26 = math.floor %25 : vector<48x1xf32>
    %27 = arith.fptosi %26 : vector<48x1xf32> to vector<48x1xi32>
    %c3_i32_3 = arith.constant 3 : i32
    %28 = vector.broadcast %c3_i32_3 : i32 to vector<48x1xi32>
    %29 = arith.muli %27, %28 : vector<48x1xi32>
    %30 = arith.subi %22, %29 : vector<48x1xi32>
    %c0_4 = arith.constant 0 : index
    %31 = memref.load %arg1[%c0_4] : memref<1xf32, #tpu.memory_space<smem>>
    %c2 = arith.constant 2 : index
    %c0_5 = arith.constant 0 : index
    %32 = memref.load %arg2[%c2, %c0_5] : memref<3x2xf32, #tpu.memory_space<smem>>
    %c2_6 = arith.constant 2 : index
    %c1 = arith.constant 1 : index
    %33 = memref.load %arg2[%c2_6, %c1] : memref<3x2xf32, #tpu.memory_space<smem>>
    %c1_i32 = arith.constant 1 : i32
    %34 = vector.broadcast %c1_i32 : i32 to vector<48x1xi32>
    %35 = arith.cmpi eq, %30, %34 : vector<48x1xi32>
    %c1_7 = arith.constant 1 : index
    %c0_8 = arith.constant 0 : index
    %36 = memref.load %arg2[%c1_7, %c0_8] : memref<3x2xf32, #tpu.memory_space<smem>>
    %37 = vector.broadcast %36 : f32 to vector<48x1xf32>
    %38 = vector.broadcast %32 : f32 to vector<48x1xf32>
    %39 = arith.select %35, %37, %38 : vector<48x1xi1>, vector<48x1xf32>
    %c1_9 = arith.constant 1 : index
    %c1_10 = arith.constant 1 : index
    %40 = memref.load %arg2[%c1_9, %c1_10] : memref<3x2xf32, #tpu.memory_space<smem>>
    %41 = vector.broadcast %40 : f32 to vector<48x1xf32>
    %42 = vector.broadcast %33 : f32 to vector<48x1xf32>
    %43 = arith.select %35, %41, %42 : vector<48x1xi1>, vector<48x1xf32>
    %c0_i32 = arith.constant 0 : i32
    %44 = vector.broadcast %c0_i32 : i32 to vector<48x1xi32>
    %45 = arith.cmpi eq, %30, %44 : vector<48x1xi32>
    %c0_11 = arith.constant 0 : index
    %c0_12 = arith.constant 0 : index
    %46 = memref.load %arg2[%c0_11, %c0_12] : memref<3x2xf32, #tpu.memory_space<smem>>
    %47 = vector.broadcast %46 : f32 to vector<48x1xf32>
    %48 = arith.select %45, %47, %39 : vector<48x1xi1>, vector<48x1xf32>
    %c0_13 = arith.constant 0 : index
    %c1_14 = arith.constant 1 : index
    %49 = memref.load %arg2[%c0_13, %c1_14] : memref<3x2xf32, #tpu.memory_space<smem>>
    %50 = vector.broadcast %49 : f32 to vector<48x1xf32>
    %51 = arith.select %45, %50, %43 : vector<48x1xi1>, vector<48x1xf32>
    %c0_i32_15 = arith.constant 0 : i32
    %52 = vector.broadcast %c0_i32_15 : i32 to vector<1x128xi32>
    %53 = arith.cmpi eq, %10, %52 : vector<1x128xi32>
    %54 = vector.shape_cast %53 : vector<1x128xi1> to vector<1x128xi1>
    %55 = vector.broadcast %54 : vector<1x128xi1> to vector<48x128xi1>
    %56 = vector.shape_cast %13 : vector<1x128xf32> to vector<1x128xf32>
    %57 = vector.broadcast %56 : vector<1x128xf32> to vector<48x128xf32>
    %58 = vector.shape_cast %20 : vector<48x1xf32> to vector<48x1xf32>
    %59 = vector.broadcast %58 : vector<48x1xf32> to vector<48x128xf32>
    %60 = arith.select %55, %57, %59 : vector<48x128xi1>, vector<48x128xf32>
    %cst_16 = arith.constant 5.000000e-01 : f32
    %61 = vector.broadcast %cst_16 : f32 to vector<48x128xf32>
    %62 = arith.subf %7, %61 : vector<48x128xf32>
    %63 = arith.addf %62, %60 : vector<48x128xf32>
    %64 = vector.broadcast %31 : f32 to vector<48x128xf32>
    %65 = arith.mulf %63, %64 : vector<48x128xf32>
    %c2_i32 = arith.constant 2 : i32
    %66 = vector.broadcast %c2_i32 : i32 to vector<1x128xi32>
    %67 = arith.cmpi eq, %10, %66 : vector<1x128xi32>
    %68 = vector.shape_cast %67 : vector<1x128xi1> to vector<1x128xi1>
    %69 = vector.broadcast %68 : vector<1x128xi1> to vector<48x128xi1>
    %70 = vector.shape_cast %48 : vector<48x1xf32> to vector<48x1xf32>
    %71 = vector.broadcast %70 : vector<48x1xf32> to vector<48x128xf32>
    %72 = vector.shape_cast %51 : vector<48x1xf32> to vector<48x1xf32>
    %73 = vector.broadcast %72 : vector<48x1xf32> to vector<48x128xf32>
    %74 = arith.select %69, %71, %73 : vector<48x128xi1>, vector<48x128xf32>
    %75 = arith.mulf %7, %7 : vector<48x128xf32>
    %76 = arith.mulf %75, %74 : vector<48x128xf32>
    %c2_i32_17 = arith.constant 2 : i32
    %77 = vector.broadcast %c2_i32_17 : i32 to vector<1x128xi32>
    %78 = arith.cmpi slt, %10, %77 : vector<1x128xi32>
    %c4_i32_18 = arith.constant 4 : i32
    %79 = vector.broadcast %c4_i32_18 : i32 to vector<1x128xi32>
    %80 = arith.cmpi slt, %10, %79 : vector<1x128xi32>
    %81 = vector.shape_cast %80 : vector<1x128xi1> to vector<1x128xi1>
    %82 = vector.broadcast %81 : vector<1x128xi1> to vector<48x128xi1>
    %83 = arith.select %82, %76, %5 : vector<48x128xi1>, vector<48x128xf32>
    %84 = vector.shape_cast %78 : vector<1x128xi1> to vector<1x128xi1>
    %85 = vector.broadcast %84 : vector<1x128xi1> to vector<48x128xi1>
    %86 = arith.select %85, %65, %83 : vector<48x128xi1>, vector<48x128xf32>
    %c0_19 = arith.constant 0 : index
    %c0_20 = arith.constant 0 : index
    %87 = vector.load %arg4[%c0_19, %c0_20] : memref<48x128xf32, #tpu.memory_space<vmem>>, vector<48x128xf32>
    tpu.vector_store %arg4[%c0_19, %c0_20], %86 {strides = array<i32>} : memref<48x128xf32, #tpu.memory_space<vmem>>, vector<48x128xf32>,
    return
  }
  func.func @transform_0(%arg0: i32) -> i32 {
    %c0_i32 = arith.constant 0 : i32
    %c0_i32_0 = arith.constant 0 : i32
    return %c0_i32 : i32
  }
  func.func @transform_1(%arg0: i32) -> (i32, i32) {
    %c0_i32 = arith.constant 0 : i32
    %c0_i32_0 = arith.constant 0 : i32
    %c0_i32_1 = arith.constant 0 : i32
    return %c0_i32, %c0_i32_0 : i32, i32
  }
  func.func @transform_2(%arg0: i32) -> (i32, i32) {
    %c0_i32 = arith.constant 0 : i32
    %c0_i32_0 = arith.constant 0 : i32
    return %arg0, %c0_i32 : i32, i32
  }
  func.func @transform_3(%arg0: i32) -> (i32, i32) {
    %c0_i32 = arith.constant 0 : i32
    %c0_i32_0 = arith.constant 0 : i32
    return %arg0, %c0_i32 : i32, i32
  }
}

module attributes {stable_mosaic.version = 11 : i64} {
  func.func @_decode_kernel(%arg0: i32, %arg1: memref<1xf32, #tpu.memory_space<smem>>, %arg2: memref<3x2xf32, #tpu.memory_space<smem>>, %arg3: memref<24x64xf32, #tpu.memory_space<vmem>>, %arg4: memref<24x64xf32, #tpu.memory_space<vmem>>) attributes {dimension_semantics = [#tpu.dimension_semantics<parallel>], iteration_bounds = array<i64: 1>, scalar_prefetch = 0 : i64, scratch_operands = 0 : i64, tpu.core_type = #tpu.core_type<tc>, window_params = [{transform_indices = @transform_0, window_bounds = array<i64: 1>}, {transform_indices = @transform_1, window_bounds = array<i64: 3, 2>}, {transform_indices = @transform_2, window_bounds = array<i64: 24, 64>}, {transform_indices = @transform_3, window_bounds = array<i64: 24, 64>}]} {
    %c0 = arith.constant 0 : index
    %c0_0 = arith.constant 0 : index
    %0 = vector.load %arg3[%c0, %c0_0] : memref<24x64xf32, #tpu.memory_space<vmem>>, vector<24x64xf32>
    %1 = arith.negf %0 : vector<24x64xf32>
    %2 = math.exp %1 : vector<24x64xf32>
    %cst = arith.constant 1.000000e+00 : f32
    %3 = vector.broadcast %cst : f32 to vector<24x64xf32>
    %4 = arith.addf %3, %2 : vector<24x64xf32>
    %5 = arith.divf %3, %4 : vector<24x64xf32>
    %cst_1 = arith.constant 2.000000e+00 : f32
    %6 = vector.broadcast %cst_1 : f32 to vector<24x64xf32>
    %7 = arith.mulf %5, %6 : vector<24x64xf32>
    %8 = tpu.iota {dimensions = array<i32: 1>} : vector<1x64xi32>
    %c15_i32 = arith.constant 15 : i32
    %9 = vector.broadcast %c15_i32 : i32 to vector<1x64xi32>
    %10 = arith.andi %8, %9 : vector<1x64xi32>
    %c4_i32 = arith.constant 4 : i32
    %11 = vector.broadcast %c4_i32 : i32 to vector<1x64xi32>
    %12 = arith.shrsi %8, %11 : vector<1x64xi32>
    %13 = arith.sitofp %12 : vector<1x64xi32> to vector<1x64xf32>
    %c24_i32 = arith.constant 24 : i32
    %14 = arith.muli %arg0, %c24_i32 : i32
    %15 = tpu.iota {dimensions = array<i32: 0>} : vector<24x1xi32>
    %16 = vector.broadcast %14 : i32 to vector<24x1xi32>
    %17 = arith.addi %16, %15 : vector<24x1xi32>
    %c3_i32 = arith.constant 3 : i32
    %18 = vector.broadcast %c3_i32 : i32 to vector<24x1xi32>
    %19 = arith.andi %17, %18 : vector<24x1xi32>
    %20 = arith.sitofp %19 : vector<24x1xi32> to vector<24x1xf32>
    %c2_i32 = arith.constant 2 : i32
    %21 = vector.broadcast %c2_i32 : i32 to vector<24x1xi32>
    %22 = arith.shrsi %17, %21 : vector<24x1xi32>
    %23 = arith.sitofp %22 : vector<24x1xi32> to vector<24x1xf32>
    %cst_2 = arith.constant 3.000000e+00 : f32
    %24 = vector.broadcast %cst_2 : f32 to vector<24x1xf32>
    %25 = arith.divf %23, %24 : vector<24x1xf32>
    %26 = math.floor %25 : vector<24x1xf32>
    %27 = arith.fptosi %26 : vector<24x1xf32> to vector<24x1xi32>
    %c3_i32_3 = arith.constant 3 : i32
    %28 = vector.broadcast %c3_i32_3 : i32 to vector<24x1xi32>
    %29 = arith.muli %27, %28 : vector<24x1xi32>
    %30 = arith.subi %22, %29 : vector<24x1xi32>
    %c0_4 = arith.constant 0 : index
    %31 = memref.load %arg1[%c0_4] : memref<1xf32, #tpu.memory_space<smem>>
    %c2 = arith.constant 2 : index
    %c0_5 = arith.constant 0 : index
    %32 = memref.load %arg2[%c2, %c0_5] : memref<3x2xf32, #tpu.memory_space<smem>>
    %c2_6 = arith.constant 2 : index
    %c1 = arith.constant 1 : index
    %33 = memref.load %arg2[%c2_6, %c1] : memref<3x2xf32, #tpu.memory_space<smem>>
    %c1_i32 = arith.constant 1 : i32
    %34 = vector.broadcast %c1_i32 : i32 to vector<24x1xi32>
    %35 = arith.cmpi eq, %30, %34 : vector<24x1xi32>
    %c1_7 = arith.constant 1 : index
    %c0_8 = arith.constant 0 : index
    %36 = memref.load %arg2[%c1_7, %c0_8] : memref<3x2xf32, #tpu.memory_space<smem>>
    %37 = vector.broadcast %36 : f32 to vector<24x1xf32>
    %38 = vector.broadcast %32 : f32 to vector<24x1xf32>
    %39 = arith.select %35, %37, %38 : vector<24x1xi1>, vector<24x1xf32>
    %c1_9 = arith.constant 1 : index
    %c1_10 = arith.constant 1 : index
    %40 = memref.load %arg2[%c1_9, %c1_10] : memref<3x2xf32, #tpu.memory_space<smem>>
    %41 = vector.broadcast %40 : f32 to vector<24x1xf32>
    %42 = vector.broadcast %33 : f32 to vector<24x1xf32>
    %43 = arith.select %35, %41, %42 : vector<24x1xi1>, vector<24x1xf32>
    %c0_i32 = arith.constant 0 : i32
    %44 = vector.broadcast %c0_i32 : i32 to vector<24x1xi32>
    %45 = arith.cmpi eq, %30, %44 : vector<24x1xi32>
    %c0_11 = arith.constant 0 : index
    %c0_12 = arith.constant 0 : index
    %46 = memref.load %arg2[%c0_11, %c0_12] : memref<3x2xf32, #tpu.memory_space<smem>>
    %47 = vector.broadcast %46 : f32 to vector<24x1xf32>
    %48 = arith.select %45, %47, %39 : vector<24x1xi1>, vector<24x1xf32>
    %c0_13 = arith.constant 0 : index
    %c1_14 = arith.constant 1 : index
    %49 = memref.load %arg2[%c0_13, %c1_14] : memref<3x2xf32, #tpu.memory_space<smem>>
    %50 = vector.broadcast %49 : f32 to vector<24x1xf32>
    %51 = arith.select %45, %50, %43 : vector<24x1xi1>, vector<24x1xf32>
    %c0_i32_15 = arith.constant 0 : i32
    %52 = vector.broadcast %c0_i32_15 : i32 to vector<1x64xi32>
    %53 = arith.cmpi eq, %10, %52 : vector<1x64xi32>
    %54 = vector.shape_cast %53 : vector<1x64xi1> to vector<1x64xi1>
    %55 = vector.broadcast %54 : vector<1x64xi1> to vector<24x64xi1>
    %56 = vector.shape_cast %13 : vector<1x64xf32> to vector<1x64xf32>
    %57 = vector.broadcast %56 : vector<1x64xf32> to vector<24x64xf32>
    %58 = vector.shape_cast %20 : vector<24x1xf32> to vector<24x1xf32>
    %59 = vector.broadcast %58 : vector<24x1xf32> to vector<24x64xf32>
    %60 = arith.select %55, %57, %59 : vector<24x64xi1>, vector<24x64xf32>
    %cst_16 = arith.constant 5.000000e-01 : f32
    %61 = vector.broadcast %cst_16 : f32 to vector<24x64xf32>
    %62 = arith.subf %7, %61 : vector<24x64xf32>
    %63 = arith.addf %62, %60 : vector<24x64xf32>
    %64 = vector.broadcast %31 : f32 to vector<24x64xf32>
    %65 = arith.mulf %63, %64 : vector<24x64xf32>
    %c2_i32_17 = arith.constant 2 : i32
    %66 = vector.broadcast %c2_i32_17 : i32 to vector<1x64xi32>
    %67 = arith.cmpi eq, %10, %66 : vector<1x64xi32>
    %68 = vector.shape_cast %67 : vector<1x64xi1> to vector<1x64xi1>
    %69 = vector.broadcast %68 : vector<1x64xi1> to vector<24x64xi1>
    %70 = vector.shape_cast %48 : vector<24x1xf32> to vector<24x1xf32>
    %71 = vector.broadcast %70 : vector<24x1xf32> to vector<24x64xf32>
    %72 = vector.shape_cast %51 : vector<24x1xf32> to vector<24x1xf32>
    %73 = vector.broadcast %72 : vector<24x1xf32> to vector<24x64xf32>
    %74 = arith.select %69, %71, %73 : vector<24x64xi1>, vector<24x64xf32>
    %75 = arith.mulf %7, %7 : vector<24x64xf32>
    %76 = arith.mulf %75, %74 : vector<24x64xf32>
    %c2_i32_18 = arith.constant 2 : i32
    %77 = vector.broadcast %c2_i32_18 : i32 to vector<1x64xi32>
    %78 = arith.cmpi slt, %10, %77 : vector<1x64xi32>
    %c4_i32_19 = arith.constant 4 : i32
    %79 = vector.broadcast %c4_i32_19 : i32 to vector<1x64xi32>
    %80 = arith.cmpi slt, %10, %79 : vector<1x64xi32>
    %81 = vector.shape_cast %80 : vector<1x64xi1> to vector<1x64xi1>
    %82 = vector.broadcast %81 : vector<1x64xi1> to vector<24x64xi1>
    %83 = arith.select %82, %76, %5 : vector<24x64xi1>, vector<24x64xf32>
    %84 = vector.shape_cast %78 : vector<1x64xi1> to vector<1x64xi1>
    %85 = vector.broadcast %84 : vector<1x64xi1> to vector<24x64xi1>
    %86 = arith.select %85, %65, %83 : vector<24x64xi1>, vector<24x64xf32>
    %c0_20 = arith.constant 0 : index
    %c0_21 = arith.constant 0 : index
    %87 = vector.load %arg4[%c0_20, %c0_21] : memref<24x64xf32, #tpu.memory_space<vmem>>, vector<24x64xf32>
    tpu.vector_store %arg4[%c0_20, %c0_21], %86 {strides = array<i32>} : memref<24x64xf32, #tpu.memory_space<vmem>>, vector<24x64xf32>,
    return
  }
  func.func @transform_0(%arg0: i32) -> i32 {
    %c0_i32 = arith.constant 0 : i32
    %c0_i32_0 = arith.constant 0 : i32
    return %c0_i32 : i32
  }
  func.func @transform_1(%arg0: i32) -> (i32, i32) {
    %c0_i32 = arith.constant 0 : i32
    %c0_i32_0 = arith.constant 0 : i32
    %c0_i32_1 = arith.constant 0 : i32
    return %c0_i32, %c0_i32_0 : i32, i32
  }
  func.func @transform_2(%arg0: i32) -> (i32, i32) {
    %c0_i32 = arith.constant 0 : i32
    %c0_i32_0 = arith.constant 0 : i32
    return %arg0, %c0_i32 : i32, i32
  }
  func.func @transform_3(%arg0: i32) -> (i32, i32) {
    %c0_i32 = arith.constant 0 : i32
    %c0_i32_0 = arith.constant 0 : i32
    return %arg0, %c0_i32 : i32, i32
  }
}

module attributes {stable_mosaic.version = 11 : i64} {
  func.func @_decode_kernel(%arg0: i32, %arg1: memref<1xf32, #tpu.memory_space<smem>>, %arg2: memref<3x2xf32, #tpu.memory_space<smem>>, %arg3: memref<12x32xf32, #tpu.memory_space<vmem>>, %arg4: memref<12x32xf32, #tpu.memory_space<vmem>>) attributes {dimension_semantics = [#tpu.dimension_semantics<parallel>], iteration_bounds = array<i64: 1>, scalar_prefetch = 0 : i64, scratch_operands = 0 : i64, tpu.core_type = #tpu.core_type<tc>, window_params = [{transform_indices = @transform_0, window_bounds = array<i64: 1>}, {transform_indices = @transform_1, window_bounds = array<i64: 3, 2>}, {transform_indices = @transform_2, window_bounds = array<i64: 12, 32>}, {transform_indices = @transform_3, window_bounds = array<i64: 12, 32>}]} {
    %c0 = arith.constant 0 : index
    %c0_0 = arith.constant 0 : index
    %0 = vector.load %arg3[%c0, %c0_0] : memref<12x32xf32, #tpu.memory_space<vmem>>, vector<12x32xf32>
    %1 = arith.negf %0 : vector<12x32xf32>
    %2 = math.exp %1 : vector<12x32xf32>
    %cst = arith.constant 1.000000e+00 : f32
    %3 = vector.broadcast %cst : f32 to vector<12x32xf32>
    %4 = arith.addf %3, %2 : vector<12x32xf32>
    %5 = arith.divf %3, %4 : vector<12x32xf32>
    %cst_1 = arith.constant 2.000000e+00 : f32
    %6 = vector.broadcast %cst_1 : f32 to vector<12x32xf32>
    %7 = arith.mulf %5, %6 : vector<12x32xf32>
    %8 = tpu.iota {dimensions = array<i32: 1>} : vector<1x32xi32>
    %c15_i32 = arith.constant 15 : i32
    %9 = vector.broadcast %c15_i32 : i32 to vector<1x32xi32>
    %10 = arith.andi %8, %9 : vector<1x32xi32>
    %c4_i32 = arith.constant 4 : i32
    %11 = vector.broadcast %c4_i32 : i32 to vector<1x32xi32>
    %12 = arith.shrsi %8, %11 : vector<1x32xi32>
    %13 = arith.sitofp %12 : vector<1x32xi32> to vector<1x32xf32>
    %c12_i32 = arith.constant 12 : i32
    %14 = arith.muli %arg0, %c12_i32 : i32
    %15 = tpu.iota {dimensions = array<i32: 0>} : vector<12x1xi32>
    %16 = vector.broadcast %14 : i32 to vector<12x1xi32>
    %17 = arith.addi %16, %15 : vector<12x1xi32>
    %c1_i32 = arith.constant 1 : i32
    %18 = vector.broadcast %c1_i32 : i32 to vector<12x1xi32>
    %19 = arith.andi %17, %18 : vector<12x1xi32>
    %20 = arith.sitofp %19 : vector<12x1xi32> to vector<12x1xf32>
    %c1_i32_2 = arith.constant 1 : i32
    %21 = vector.broadcast %c1_i32_2 : i32 to vector<12x1xi32>
    %22 = arith.shrsi %17, %21 : vector<12x1xi32>
    %23 = arith.sitofp %22 : vector<12x1xi32> to vector<12x1xf32>
    %cst_3 = arith.constant 3.000000e+00 : f32
    %24 = vector.broadcast %cst_3 : f32 to vector<12x1xf32>
    %25 = arith.divf %23, %24 : vector<12x1xf32>
    %26 = math.floor %25 : vector<12x1xf32>
    %27 = arith.fptosi %26 : vector<12x1xf32> to vector<12x1xi32>
    %c3_i32 = arith.constant 3 : i32
    %28 = vector.broadcast %c3_i32 : i32 to vector<12x1xi32>
    %29 = arith.muli %27, %28 : vector<12x1xi32>
    %30 = arith.subi %22, %29 : vector<12x1xi32>
    %c0_4 = arith.constant 0 : index
    %31 = memref.load %arg1[%c0_4] : memref<1xf32, #tpu.memory_space<smem>>
    %c2 = arith.constant 2 : index
    %c0_5 = arith.constant 0 : index
    %32 = memref.load %arg2[%c2, %c0_5] : memref<3x2xf32, #tpu.memory_space<smem>>
    %c2_6 = arith.constant 2 : index
    %c1 = arith.constant 1 : index
    %33 = memref.load %arg2[%c2_6, %c1] : memref<3x2xf32, #tpu.memory_space<smem>>
    %c1_i32_7 = arith.constant 1 : i32
    %34 = vector.broadcast %c1_i32_7 : i32 to vector<12x1xi32>
    %35 = arith.cmpi eq, %30, %34 : vector<12x1xi32>
    %c1_8 = arith.constant 1 : index
    %c0_9 = arith.constant 0 : index
    %36 = memref.load %arg2[%c1_8, %c0_9] : memref<3x2xf32, #tpu.memory_space<smem>>
    %37 = vector.broadcast %36 : f32 to vector<12x1xf32>
    %38 = vector.broadcast %32 : f32 to vector<12x1xf32>
    %39 = arith.select %35, %37, %38 : vector<12x1xi1>, vector<12x1xf32>
    %c1_10 = arith.constant 1 : index
    %c1_11 = arith.constant 1 : index
    %40 = memref.load %arg2[%c1_10, %c1_11] : memref<3x2xf32, #tpu.memory_space<smem>>
    %41 = vector.broadcast %40 : f32 to vector<12x1xf32>
    %42 = vector.broadcast %33 : f32 to vector<12x1xf32>
    %43 = arith.select %35, %41, %42 : vector<12x1xi1>, vector<12x1xf32>
    %c0_i32 = arith.constant 0 : i32
    %44 = vector.broadcast %c0_i32 : i32 to vector<12x1xi32>
    %45 = arith.cmpi eq, %30, %44 : vector<12x1xi32>
    %c0_12 = arith.constant 0 : index
    %c0_13 = arith.constant 0 : index
    %46 = memref.load %arg2[%c0_12, %c0_13] : memref<3x2xf32, #tpu.memory_space<smem>>
    %47 = vector.broadcast %46 : f32 to vector<12x1xf32>
    %48 = arith.select %45, %47, %39 : vector<12x1xi1>, vector<12x1xf32>
    %c0_14 = arith.constant 0 : index
    %c1_15 = arith.constant 1 : index
    %49 = memref.load %arg2[%c0_14, %c1_15] : memref<3x2xf32, #tpu.memory_space<smem>>
    %50 = vector.broadcast %49 : f32 to vector<12x1xf32>
    %51 = arith.select %45, %50, %43 : vector<12x1xi1>, vector<12x1xf32>
    %c0_i32_16 = arith.constant 0 : i32
    %52 = vector.broadcast %c0_i32_16 : i32 to vector<1x32xi32>
    %53 = arith.cmpi eq, %10, %52 : vector<1x32xi32>
    %54 = vector.shape_cast %53 : vector<1x32xi1> to vector<1x32xi1>
    %55 = vector.broadcast %54 : vector<1x32xi1> to vector<12x32xi1>
    %56 = vector.shape_cast %13 : vector<1x32xf32> to vector<1x32xf32>
    %57 = vector.broadcast %56 : vector<1x32xf32> to vector<12x32xf32>
    %58 = vector.shape_cast %20 : vector<12x1xf32> to vector<12x1xf32>
    %59 = vector.broadcast %58 : vector<12x1xf32> to vector<12x32xf32>
    %60 = arith.select %55, %57, %59 : vector<12x32xi1>, vector<12x32xf32>
    %cst_17 = arith.constant 5.000000e-01 : f32
    %61 = vector.broadcast %cst_17 : f32 to vector<12x32xf32>
    %62 = arith.subf %7, %61 : vector<12x32xf32>
    %63 = arith.addf %62, %60 : vector<12x32xf32>
    %64 = vector.broadcast %31 : f32 to vector<12x32xf32>
    %65 = arith.mulf %63, %64 : vector<12x32xf32>
    %c2_i32 = arith.constant 2 : i32
    %66 = vector.broadcast %c2_i32 : i32 to vector<1x32xi32>
    %67 = arith.cmpi eq, %10, %66 : vector<1x32xi32>
    %68 = vector.shape_cast %67 : vector<1x32xi1> to vector<1x32xi1>
    %69 = vector.broadcast %68 : vector<1x32xi1> to vector<12x32xi1>
    %70 = vector.shape_cast %48 : vector<12x1xf32> to vector<12x1xf32>
    %71 = vector.broadcast %70 : vector<12x1xf32> to vector<12x32xf32>
    %72 = vector.shape_cast %51 : vector<12x1xf32> to vector<12x1xf32>
    %73 = vector.broadcast %72 : vector<12x1xf32> to vector<12x32xf32>
    %74 = arith.select %69, %71, %73 : vector<12x32xi1>, vector<12x32xf32>
    %75 = arith.mulf %7, %7 : vector<12x32xf32>
    %76 = arith.mulf %75, %74 : vector<12x32xf32>
    %c2_i32_18 = arith.constant 2 : i32
    %77 = vector.broadcast %c2_i32_18 : i32 to vector<1x32xi32>
    %78 = arith.cmpi slt, %10, %77 : vector<1x32xi32>
    %c4_i32_19 = arith.constant 4 : i32
    %79 = vector.broadcast %c4_i32_19 : i32 to vector<1x32xi32>
    %80 = arith.cmpi slt, %10, %79 : vector<1x32xi32>
    %81 = vector.shape_cast %80 : vector<1x32xi1> to vector<1x32xi1>
    %82 = vector.broadcast %81 : vector<1x32xi1> to vector<12x32xi1>
    %83 = arith.select %82, %76, %5 : vector<12x32xi1>, vector<12x32xf32>
    %84 = vector.shape_cast %78 : vector<1x32xi1> to vector<1x32xi1>
    %85 = vector.broadcast %84 : vector<1x32xi1> to vector<12x32xi1>
    %86 = arith.select %85, %65, %83 : vector<12x32xi1>, vector<12x32xf32>
    %c0_20 = arith.constant 0 : index
    %c0_21 = arith.constant 0 : index
    %87 = vector.load %arg4[%c0_20, %c0_21] : memref<12x32xf32, #tpu.memory_space<vmem>>, vector<12x32xf32>
    tpu.vector_store %arg4[%c0_20, %c0_21], %86 {strides = array<i32>} : memref<12x32xf32, #tpu.memory_space<vmem>>, vector<12x32xf32>,
    return
  }
  func.func @transform_0(%arg0: i32) -> i32 {
    %c0_i32 = arith.constant 0 : i32
    %c0_i32_0 = arith.constant 0 : i32
    return %c0_i32 : i32
  }
  func.func @transform_1(%arg0: i32) -> (i32, i32) {
    %c0_i32 = arith.constant 0 : i32
    %c0_i32_0 = arith.constant 0 : i32
    %c0_i32_1 = arith.constant 0 : i32
    return %c0_i32, %c0_i32_0 : i32, i32
  }
  func.func @transform_2(%arg0: i32) -> (i32, i32) {
    %c0_i32 = arith.constant 0 : i32
    %c0_i32_0 = arith.constant 0 : i32
    return %arg0, %c0_i32 : i32, i32
  }
  func.func @transform_3(%arg0: i32) -> (i32, i32) {
    %c0_i32 = arith.constant 0 : i32
    %c0_i32_0 = arith.constant 0 : i32
    return %arg0, %c0_i32 : i32, i32
  }
}

</mosaic_0001>

<llo_original>
// kernel: detect_forward.3
$region0: #{detect_forward.3}
  #allocation0 [shape = 'u32[]', space=smem, size = 0x4, offset = 0x4, fixed_abs, tag = 'smem constant byte address 0x4 - core index']
  #allocation1 [shape = 'u32[144,128]{1,0:T(1,128)}', space=vmem, size = 0x12000, scoped, tag = 'internal scratch']
  #allocation2 [shape = 'f32[1]{0:T(128)S(6)}', space=smem, size = 0x200, scoped, tag = 'scoped memory for detect_forward.3']
  %s0 = inlined_call_operand.<no memory space> [shape: f32[1], index: 0, kind: input, shape index: {}]
  %s1 = inlined_call_operand.vmem [shape: f32[3,2], index: 1, kind: input, shape index: {}]
  %s2 = inlined_call_operand.vmem [shape: f32[48,128], index: 2, kind: input, shape index: {}]
  %s3 = inlined_call_operand.vmem [shape: f32[48,128], index: 3, kind: output, shape index: {}]
  %s4 = sld [smem:[#allocation0]]
  $region26: #{detect_forward.3} parent=0
    _
  %s6 = ssub.s32 1, %s4
  %s7 = scalar_select 0, %s6, %s4
  %8 = sst [smem:[#allocation2]] %s0
  $region1: #{detect_forward.3} parent=0
    #allocation3 [shape = 'u8[2048]{0}', space=smem, size = 0x800, scoped, tag = 'input window, operand 1, single buffered']
    #allocation4 [shape = 's32[1]{0}', space=sflag, size = 0x4, scoped, tag = 'scoped memory for detect_forward.3']
    %9 = vsyncpa [#allocation4], 0
    // Predicated region
    $region2: #{detect_forward.3} parent=1 // pred_check
      _
    $region3: #{detect_forward.3} parent=1 // pred_check_branch
      %11 = sbr.rel (0) target = $region5
    $region4: #{detect_forward.3} parent=1 // pred_region
      _
    $region5: #{detect_forward.3} parent=1 // pred_fallthru
      _
    // Predicated region
    $region6: #{detect_forward.3} parent=1 // pred_check
      _
    $region7: #{detect_forward.3} parent=1 // pred_check_branch
      %13 = sbr.rel (0) target = $region9
    $region8: #{detect_forward.3} parent=1 // pred_region
      %s15 = ssub.s32 64, 64
      %16 = vsyncadd [#allocation4], %s15
      %s18 = sshll.u32 %s1, 4
      %s19 = int_to_ptr.vmem [resolvable:$true] %s18
      %21 = dma.vmem_to_smem %s19, 64, [#allocation3], [#allocation4]
    $region9: #{detect_forward.3} parent=1 // pred_fallthru
      _
    // Predicated region
    $region10: #{detect_forward.3} parent=1 // pred_check
      _
    $region11: #{detect_forward.3} parent=1 // pred_check_branch
      %23 = sbr.rel (0) target = $region13
    $region12: #{detect_forward.3} parent=1 // pred_region
      _
    $region13: #{detect_forward.3} parent=1 // pred_fallthru
      _
    // Predicated region
    $region14: #{detect_forward.3} parent=1 // pred_check
      _
    $region15: #{detect_forward.3} parent=1 // pred_check_branch
      %25 = sbr.rel (0) target = $region17
    $region16: #{detect_forward.3} parent=1 // pred_region
      %26 = dma.done [#allocation4], 64
    $region17: #{detect_forward.3} parent=1 // pred_fallthru
      _
    %27 = sfence
    %v28 = vld [vmem:[%s2] sm:$0xff]
    %v29 = vld [vmem:[%s2 + $0x8] sm:$0xff]
    %v30 = vld [vmem:[%s2 + $0x10] sm:$0xff]
    %v31 = vld [vmem:[%s2 + $0x18] sm:$0xff]
    %v32 = vld [vmem:[%s2 + $0x20] sm:$0xff]
    %v33 = vld [vmem:[%s2 + $0x28] sm:$0xff]
    %v34 = vxor.u32 %v28, 2147483648
    %v35 = vxor.u32 %v29, 2147483648
    %v36 = vxor.u32 %v30, 2147483648
    %v37 = vxor.u32 %v31, 2147483648
    %v38 = vxor.u32 %v32, 2147483648
    %v39 = vxor.u32 %v33, 2147483648
    %v40 = vmul.f32 %v34, 1.442695
    %v41 = vpow.pop %v40
    %v42 = vmul.f32 %v35, 1.442695
    %v43 = vpow.pop %v42
    %v44 = vmul.f32 %v36, 1.442695
    %v45 = vpow.pop %v44
    %v46 = vmul.f32 %v37, 1.442695
    %v47 = vpow.pop %v46
    %v48 = vmul.f32 %v38, 1.442695
    %v49 = vpow.pop %v48
    %v50 = vmul.f32 %v39, 1.442695
    %v51 = vpow.pop %v50
    %v52 = vadd.f32 %v41, 1.0
    %v53 = vadd.f32 %v43, 1.0
    %v54 = vadd.f32 %v45, 1.0
    %v55 = vadd.f32 %v47, 1.0
    %v56 = vadd.f32 %v49, 1.0
    %v57 = vadd.f32 %v51, 1.0
    %v58 = vrcp.pop %v52
    %v59 = vmul.f32 1.0, %v58
    %v60 = vrcp.pop %v53
    %v61 = vmul.f32 1.0, %v60
    %v62 = vrcp.pop %v54
    %v63 = vmul.f32 1.0, %v62
    %v64 = vrcp.pop %v55
    %v65 = vmul.f32 1.0, %v64
    %v66 = vrcp.pop %v56
    %v67 = vmul.f32 1.0, %v66
    %v68 = vrcp.pop %v57
    %v69 = vmul.f32 1.0, %v68
    %v70 = vmul.f32 %v59, 2.0
    %v71 = vmul.f32 %v61, 2.0
    %v72 = vmul.f32 %v63, 2.0
    %v73 = vmul.f32 %v65, 2.0
    %v74 = vmul.f32 %v67, 2.0
    %v75 = vmul.f32 %v69, 2.0
    %v76 = vlaneseq
    %v77 = vand.u32 %v76, 127
    %v78 = vand.u32 %v77, 15
    %v79 = vshra.s32 %v77, 4
    %v80 = vcvt.s32.f32 %v79
    %s81 = smul.u32 0, 48
    %v82 = vlaneseq
    %v83 = vshrl.u32 %v82, 7
    %v84 = vadd.s32 %v83, 8
    %v85 = vadd.s32 %v83, 16
    %v86 = vadd.s32 %v83, 24
    %v87 = vadd.s32 %v83, 32
    %v88 = vadd.s32 %v83, 40
    %v89 = vstv %s81
    %v90 = vadd.s32 %v89, %v83
    %v91 = vadd.s32 %v89, %v84
    %v92 = vadd.s32 %v89, %v85
    %v93 = vadd.s32 %v89, %v86
    %v94 = vadd.s32 %v89, %v87
    %v95 = vadd.s32 %v89, %v88
    %v96 = vand.u32 %v90, 7
    %v97 = vand.u32 %v91, 7
    %v98 = vand.u32 %v92, 7
    %v99 = vand.u32 %v93, 7
    %v100 = vand.u32 %v94, 7
    %v101 = vand.u32 %v95, 7
    %v102 = vcvt.s32.f32 %v96
    %v103 = vcvt.s32.f32 %v97
    %v104 = vcvt.s32.f32 %v98
    %v105 = vcvt.s32.f32 %v99
    %v106 = vcvt.s32.f32 %v100
    %v107 = vcvt.s32.f32 %v101
    %v108 = vshra.s32 %v90, 3
    %v109 = vshra.s32 %v91, 3
    %v110 = vshra.s32 %v92, 3
    %v111 = vshra.s32 %v93, 3
    %v112 = vshra.s32 %v94, 3
    %v113 = vshra.s32 %v95, 3
    %v114 = vcvt.s32.f32 %v108
    %v115 = vcvt.s32.f32 %v109
    %v116 = vcvt.s32.f32 %v110
    %v117 = vcvt.s32.f32 %v111
    %v118 = vcvt.s32.f32 %v112
    %v119 = vcvt.s32.f32 %v113
    %v120 = vrcp.pop 3.0
    %v121 = vmul.f32 %v114, %v120
    %v122 = vmul.f32 %v115, %v120
    %v123 = vmul.f32 %v116, %v120
    %v124 = vmul.f32 %v117, %v120
    %v125 = vmul.f32 %v118, %v120
    %v126 = vmul.f32 %v119, %v120
    %v127 = vfloor.f32 %v121
    %v128 = vfloor.f32 %v122
    %v129 = vfloor.f32 %v123
    %v130 = vfloor.f32 %v124
    %v131 = vfloor.f32 %v125
    %v132 = vfloor.f32 %v126
    %v133 = vcvt.f32.s32.to.zero.pseudo %v127
    %v134 = vcvt.f32.s32.to.zero.pseudo %v128
    %v135 = vcvt.f32.s32.to.zero.pseudo %v129
    %v136 = vcvt.f32.s32.to.zero.pseudo %v130
    %v137 = vcvt.f32.s32.to.zero.pseudo %v131
    %v138 = vcvt.f32.s32.to.zero.pseudo %v132
    %v139 = vmul.u32 %v133, 3
    %v140 = vmul.u32 %v134, 3
    %v141 = vmul.u32 %v135, 3
    %v142 = vmul.u32 %v136, 3
    %v143 = vmul.u32 %v137, 3
    %v144 = vmul.u32 %v138, 3
    %v145 = vsub.s32 %v108, %v139
    %v146 = vsub.s32 %v109, %v140
    %v147 = vsub.s32 %v110, %v141
    %v148 = vsub.s32 %v111, %v142
    %v149 = vsub.s32 %v112, %v143
    %v150 = vsub.s32 %v113, %v144
    %s151 = sld [smem:[#allocation2]]
    %s152 = sld [smem:[#allocation3 + $0x100]]
    %s153 = sld [smem:[#allocation3 + $0x101]]
    %vm154 = vcmp.eq.s32.totalorder %v145, 1
    %vm155 = vcmp.eq.s32.totalorder %v146, 1
    %vm156 = vcmp.eq.s32.totalorder %v147, 1
    %vm157 = vcmp.eq.s32.totalorder %v148, 1
    %vm158 = vcmp.eq.s32.totalorder %v149, 1
    %vm159 = vcmp.eq.s32.totalorder %v150, 1
    %s160 = sld [smem:[#allocation3 + $0x80]]
    %v161 = vstv %s160
    %v162 = vstv %s152
    %v163 = vsel %vm154, %v161, %v162
    %v164 = vsel %vm155, %v161, %v162
    %v165 = vsel %vm156, %v161, %v162
    %v166 = vsel %vm157, %v161, %v162
    %v167 = vsel %vm158, %v161, %v162
    %v168 = vsel %vm159, %v161, %v162
    %s169 = sld [smem:[#allocation3 + $0x81]]
    %v170 = vstv %s169
    %v171 = vstv %s153
    %v172 = vsel %vm154, %v170, %v171
    %v173 = vsel %vm155, %v170, %v171
    %v174 = vsel %vm156, %v170, %v171
    %v175 = vsel %vm157, %v170, %v171
    %v176 = vsel %vm158, %v170, %v171
    %v177 = vsel %vm159, %v170, %v171
    %vm178 = vcmp.eq.s32.totalorder %v145, 0
    %vm179 = vcmp.eq.s32.totalorder %v146, 0
    %vm180 = vcmp.eq.s32.totalorder %v147, 0
    %vm181 = vcmp.eq.s32.totalorder %v148, 0
    %vm182 = vcmp.eq.s32.totalorder %v149, 0
    %vm183 = vcmp.eq.s32.totalorder %v150, 0
    %s184 = sld [smem:[#allocation3]]
    %v185 = vstv %s184
    %v186 = vsel %vm178, %v185, %v163
    %v187 = vsel %vm179, %v185, %v164
    %v188 = vsel %vm180, %v185, %v165
    %v189 = vsel %vm181, %v185, %v166
    %v190 = vsel %vm182, %v185, %v167
    %v191 = vsel %vm183, %v185, %v168
    %s192 = sld [smem:[#allocation3 + $0x1]]
    %v193 = vstv %s192
    %v194 = vsel %vm178, %v193, %v172
    %v195 = vsel %vm179, %v193, %v173
    %v196 = vsel %vm180, %v193, %v174
    %v197 = vsel %vm181, %v193, %v175
    %v198 = vsel %vm182, %v193, %v176
    %v199 = vsel %vm183, %v193, %v177
    %vm200 = vcmp.eq.s32.totalorder %v78, 0
    %v201 = vsel %vm200, 1, 0
    %vm202 = vcmp.eq.s32.totalorder %v201, 1
    %v203 = vsel %vm202, %v80, %v102
    %v204 = vsel %vm202, %v80, %v103
    %v205 = vsel %vm202, %v80, %v104
    %v206 = vsel %vm202, %v80, %v105
    %v207 = vsel %vm202, %v80, %v106
    %v208 = vsel %vm202, %v80, %v107
    %v209 = vsub.f32 %v70, 0.5
    %v210 = vsub.f32 %v71, 0.5
    %v211 = vsub.f32 %v72, 0.5
    %v212 = vsub.f32 %v73, 0.5
    %v213 = vsub.f32 %v74, 0.5
    %v214 = vsub.f32 %v75, 0.5
    %v215 = vadd.f32 %v209, %v203
    %v216 = vadd.f32 %v210, %v204
    %v217 = vadd.f32 %v211, %v205
    %v218 = vadd.f32 %v212, %v206
    %v219 = vadd.f32 %v213, %v207
    %v220 = vadd.f32 %v214, %v208
    %v221 = vstv %s151
    %v222 = vmul.f32 %v215, %v221
    %v223 = vmul.f32 %v216, %v221
    %v224 = vmul.f32 %v217, %v221
    %v225 = vmul.f32 %v218, %v221
    %v226 = vmul.f32 %v219, %v221
    %v227 = vmul.f32 %v220, %v221
    %vm228 = vcmp.eq.s32.totalorder %v78, 2
    %v229 = vsel %vm228, 1, 0
    %vm230 = vcmp.eq.s32.totalorder %v229, 1
    %v231 = vsel %vm230, %v186, %v194
    %v232 = vsel %vm230, %v187, %v195
    %v233 = vsel %vm230, %v188, %v196
    %v234 = vsel %vm230, %v189, %v197
    %v235 = vsel %vm230, %v190, %v198
    %v236 = vsel %vm230, %v191, %v199
    %v237 = vmul.f32 %v70, %v70
    %v238 = vmul.f32 %v71, %v71
    %v239 = vmul.f32 %v72, %v72
    %v240 = vmul.f32 %v73, %v73
    %v241 = vmul.f32 %v74, %v74
    %v242 = vmul.f32 %v75, %v75
    %v243 = vmul.f32 %v237, %v231
    %v244 = vmul.f32 %v238, %v232
    %v245 = vmul.f32 %v239, %v233
    %v246 = vmul.f32 %v240, %v234
    %v247 = vmul.f32 %v241, %v235
    %v248 = vmul.f32 %v242, %v236
    %vm249 = vcmp.lt.s32.totalorder %v78, 2
    %vm250 = vcmp.lt.s32.totalorder %v78, 4
    %v251 = vsel %vm250, 1, 0
    %vm252 = vcmp.eq.s32.totalorder %v251, 1
    %v253 = vsel %vm252, %v243, %v59
    %v254 = vsel %vm252, %v244, %v61
    %v255 = vsel %vm252, %v245, %v63
    %v256 = vsel %vm252, %v246, %v65
    %v257 = vsel %vm252, %v247, %v67
    %v258 = vsel %vm252, %v248, %v69
    %v259 = vsel %vm249, 1, 0
    %vm260 = vcmp.eq.s32.totalorder %v259, 1
    %v261 = vsel %vm260, %v222, %v253
    %v262 = vsel %vm260, %v223, %v254
    %v263 = vsel %vm260, %v224, %v255
    %v264 = vsel %vm260, %v225, %v256
    %v265 = vsel %vm260, %v226, %v257
    %v266 = vsel %vm260, %v227, %v258
    %267 = vst [vmem:[%s3] sm:$0xff] %v261
    %268 = vst [vmem:[%s3 + $0x8] sm:$0xff] %v262
    %269 = vst [vmem:[%s3 + $0x10] sm:$0xff] %v263
    %270 = vst [vmem:[%s3 + $0x18] sm:$0xff] %v264
    %271 = vst [vmem:[%s3 + $0x20] sm:$0xff] %v265
    %272 = vst [vmem:[%s3 + $0x28] sm:$0xff] %v266
    // Predicated region
    $region18: #{detect_forward.3} parent=1 // pred_check
      _
    $region19: #{detect_forward.3} parent=1 // pred_check_branch
      %274 = sbr.rel (0) target = $region21
    $region20: #{detect_forward.3} parent=1 // pred_region
      _
    $region21: #{detect_forward.3} parent=1 // pred_fallthru
      _
    // Predicated region
    $region22: #{detect_forward.3} parent=1 // pred_check
      _
    $region23: #{detect_forward.3} parent=1 // pred_check_branch
      %276 = sbr.rel (0) target = $region25
    $region24: #{detect_forward.3} parent=1 // pred_region
      _
    $region25: #{detect_forward.3} parent=1 // pred_fallthru
      _
    %277 = vsyncpa [#allocation4], 1

// kernel: detect_forward.5
$region0: #{detect_forward.5}
  #allocation0 [shape = 'u32[]', space=smem, size = 0x4, offset = 0x4, fixed_abs, tag = 'smem constant byte address 0x4 - core index']
  #allocation1 [shape = 'u32[144,128]{1,0:T(1,128)}', space=vmem, size = 0x12000, scoped, tag = 'internal scratch']
  #allocation2 [shape = 'f32[1]{0:T(128)S(6)}', space=smem, size = 0x200, scoped, tag = 'scoped memory for detect_forward.5']
  %s0 = inlined_call_operand.<no memory space> [shape: f32[1], index: 0, kind: input, shape index: {}]
  %s1 = inlined_call_operand.vmem [shape: f32[3,2], index: 1, kind: input, shape index: {}]
  %s2 = inlined_call_operand.vmem [shape: f32[12,32], index: 2, kind: input, shape index: {}]
  %s3 = inlined_call_operand.vmem [shape: f32[12,32], index: 3, kind: output, shape index: {}]
  %s4 = sld [smem:[#allocation0]]
  $region26: #{detect_forward.5} parent=0
    _
  %s6 = ssub.s32 1, %s4
  %s7 = scalar_select 0, %s6, %s4
  %8 = sst [smem:[#allocation2]] %s0
  $region1: #{detect_forward.5} parent=0
    #allocation3 [shape = 'u8[2048]{0}', space=smem, size = 0x800, scoped, tag = 'input window, operand 1, single buffered']
    #allocation4 [shape = 's32[1]{0}', space=sflag, size = 0x4, scoped, tag = 'scoped memory for detect_forward.5']
    %9 = vsyncpa [#allocation4], 0
    // Predicated region
    $region2: #{detect_forward.5} parent=1 // pred_check
      _
    $region3: #{detect_forward.5} parent=1 // pred_check_branch
      %11 = sbr.rel (0) target = $region5
    $region4: #{detect_forward.5} parent=1 // pred_region
      _
    $region5: #{detect_forward.5} parent=1 // pred_fallthru
      _
    // Predicated region
    $region6: #{detect_forward.5} parent=1 // pred_check
      _
    $region7: #{detect_forward.5} parent=1 // pred_check_branch
      %13 = sbr.rel (0) target = $region9
    $region8: #{detect_forward.5} parent=1 // pred_region
      %s15 = ssub.s32 64, 64
      %16 = vsyncadd [#allocation4], %s15
      %s18 = sshll.u32 %s1, 4
      %s19 = int_to_ptr.vmem [resolvable:$true] %s18
      %21 = dma.vmem_to_smem %s19, 64, [#allocation3], [#allocation4]
    $region9: #{detect_forward.5} parent=1 // pred_fallthru
      _
    // Predicated region
    $region10: #{detect_forward.5} parent=1 // pred_check
      _
    $region11: #{detect_forward.5} parent=1 // pred_check_branch
      %23 = sbr.rel (0) target = $region13
    $region12: #{detect_forward.5} parent=1 // pred_region
      _
    $region13: #{detect_forward.5} parent=1 // pred_fallthru
      _
    // Predicated region
    $region14: #{detect_forward.5} parent=1 // pred_check
      _
    $region15: #{detect_forward.5} parent=1 // pred_check_branch
      %25 = sbr.rel (0) target = $region17
    $region16: #{detect_forward.5} parent=1 // pred_region
      %26 = dma.done [#allocation4], 64
    $region17: #{detect_forward.5} parent=1 // pred_fallthru
      _
    %27 = sfence
    %v28 = vld [vmem:[%s2] sm:$0xff]
    %v29 = vld [vmem:[%s2 + $0x8] sm:$0xf]
    %v30 = vxor.u32 %v28, 2147483648
    %v31 = vxor.u32 %v29, 2147483648
    %v32 = vmul.f32 %v30, 1.442695
    %v33 = vpow.pop %v32
    %v34 = vmul.f32 %v31, 1.442695
    %v35 = vpow.pop %v34
    %v36 = vadd.f32 %v33, 1.0
    %v37 = vadd.f32 %v35, 1.0
    %v38 = vrcp.pop %v36
    %v39 = vmul.f32 1.0, %v38
    %v40 = vrcp.pop %v37
    %v41 = vmul.f32 1.0, %v40
    %v42 = vmul.f32 %v39, 2.0
    %v43 = vmul.f32 %v41, 2.0
    %v44 = vlaneseq
    %v45 = vand.u32 %v44, 127
    %v46 = vand.u32 %v45, 15
    %v47 = vshra.s32 %v45, 4
    %v48 = vcvt.s32.f32 %v47
    %s49 = smul.u32 0, 12
    %v50 = vlaneseq
    %v51 = vshrl.u32 %v50, 7
    %v52 = vadd.s32 %v51, 8
    %v53 = vstv %s49
    %v54 = vadd.s32 %v53, %v51
    %v55 = vadd.s32 %v53, %v52
    %v56 = vand.u32 %v54, 1
    %v57 = vand.u32 %v55, 1
    %v58 = vcvt.s32.f32 %v56
    %v59 = vcvt.s32.f32 %v57
    %v60 = vshra.s32 %v54, 1
    %v61 = vshra.s32 %v55, 1
    %v62 = vcvt.s32.f32 %v60
    %v63 = vcvt.s32.f32 %v61
    %v64 = vrcp.pop 3.0
    %v65 = vmul.f32 %v62, %v64
    %v66 = vmul.f32 %v63, %v64
    %v67 = vfloor.f32 %v65
    %v68 = vfloor.f32 %v66
    %v69 = vcvt.f32.s32.to.zero.pseudo %v67
    %v70 = vcvt.f32.s32.to.zero.pseudo %v68
    %v71 = vmul.u32 %v69, 3
    %v72 = vmul.u32 %v70, 3
    %v73 = vsub.s32 %v60, %v71
    %v74 = vsub.s32 %v61, %v72
    %s75 = sld [smem:[#allocation2]]
    %s76 = sld [smem:[#allocation3 + $0x100]]
    %s77 = sld [smem:[#allocation3 + $0x101]]
    %vm78 = vcmp.eq.s32.totalorder %v73, 1
    %vm79 = vcmp.eq.s32.totalorder %v74, 1
    %s80 = sld [smem:[#allocation3 + $0x80]]
    %v81 = vstv %s80
    %v82 = vstv %s76
    %v83 = vsel %vm78, %v81, %v82
    %v84 = vsel %vm79, %v81, %v82
    %s85 = sld [smem:[#allocation3 + $0x81]]
    %v86 = vstv %s85
    %v87 = vstv %s77
    %v88 = vsel %vm78, %v86, %v87
    %v89 = vsel %vm79, %v86, %v87
    %vm90 = vcmp.eq.s32.totalorder %v73, 0
    %vm91 = vcmp.eq.s32.totalorder %v74, 0
    %s92 = sld [smem:[#allocation3]]
    %v93 = vstv %s92
    %v94 = vsel %vm90, %v93, %v83
    %v95 = vsel %vm91, %v93, %v84
    %s96 = sld [smem:[#allocation3 + $0x1]]
    %v97 = vstv %s96
    %v98 = vsel %vm90, %v97, %v88
    %v99 = vsel %vm91, %v97, %v89
    %vm100 = vcmp.eq.s32.totalorder %v46, 0
    %v101 = vsel %vm100, 1, 0
    %vm102 = vcmp.eq.s32.totalorder %v101, 1
    %v103 = vsel %vm102, %v48, %v58
    %v104 = vsel %vm102, %v48, %v59
    %v105 = vsub.f32 %v42, 0.5
    %v106 = vsub.f32 %v43, 0.5
    %v107 = vadd.f32 %v105, %v103
    %v108 = vadd.f32 %v106, %v104
    %v109 = vstv %s75
    %v110 = vmul.f32 %v107, %v109
    %v111 = vmul.f32 %v108, %v109
    %vm112 = vcmp.eq.s32.totalorder %v46, 2
    %v113 = vsel %vm112, 1, 0
    %vm114 = vcmp.eq.s32.totalorder %v113, 1
    %v115 = vsel %vm114, %v94, %v98
    %v116 = vsel %vm114, %v95, %v99
    %v117 = vmul.f32 %v42, %v42
    %v118 = vmul.f32 %v43, %v43
    %v119 = vmul.f32 %v117, %v115
    %v120 = vmul.f32 %v118, %v116
    %vm121 = vcmp.lt.s32.totalorder %v46, 2
    %vm122 = vcmp.lt.s32.totalorder %v46, 4
    %v123 = vsel %vm122, 1, 0
    %vm124 = vcmp.eq.s32.totalorder %v123, 1
    %v125 = vsel %vm124, %v119, %v39
    %v126 = vsel %vm124, %v120, %v41
    %v127 = vsel %vm121, 1, 0
    %vm128 = vcmp.eq.s32.totalorder %v127, 1
    %v129 = vsel %vm128, %v110, %v125
    %v130 = vsel %vm128, %v111, %v126
    %vm131 = vcmask 261120
    %132 = vst.msk [vmem:[%s3] sm:$0xff] %vm131, %v129
    %vm133 = vcmask 257024
    %134 = vst.msk [vmem:[%s3 + $0x8] sm:$0xf] %vm133, %v130
    // Predicated region
    $region18: #{detect_forward.5} parent=1 // pred_check
      _
    $region19: #{detect_forward.5} parent=1 // pred_check_branch
      %136 = sbr.rel (0) target = $region21
    $region20: #{detect_forward.5} parent=1 // pred_region
      _
    $region21: #{detect_forward.5} parent=1 // pred_fallthru
      _
    // Predicated region
    $region22: #{detect_forward.5} parent=1 // pred_check
      _
    $region23: #{detect_forward.5} parent=1 // pred_check_branch
      %138 = sbr.rel (0) target = $region25
    $region24: #{detect_forward.5} parent=1 // pred_region
      _
    $region25: #{detect_forward.5} parent=1 // pred_fallthru
      _
    %139 = vsyncpa [#allocation4], 1

// kernel: detect_forward.4
$region0: #{detect_forward.4}
  #allocation0 [shape = 'u32[]', space=smem, size = 0x4, offset = 0x4, fixed_abs, tag = 'smem constant byte address 0x4 - core index']
  #allocation1 [shape = 'u32[144,128]{1,0:T(1,128)}', space=vmem, size = 0x12000, scoped, tag = 'internal scratch']
  #allocation2 [shape = 'f32[1]{0:T(128)S(6)}', space=smem, size = 0x200, scoped, tag = 'scoped memory for detect_forward.4']
  %s0 = inlined_call_operand.<no memory space> [shape: f32[1], index: 0, kind: input, shape index: {}]
  %s1 = inlined_call_operand.vmem [shape: f32[3,2], index: 1, kind: input, shape index: {}]
  %s2 = inlined_call_operand.vmem [shape: f32[24,64], index: 2, kind: input, shape index: {}]
  %s3 = inlined_call_operand.vmem [shape: f32[24,64], index: 3, kind: output, shape index: {}]
  %s4 = sld [smem:[#allocation0]]
  $region26: #{detect_forward.4} parent=0
    _
  %s6 = ssub.s32 1, %s4
  %s7 = scalar_select 0, %s6, %s4
  %8 = sst [smem:[#allocation2]] %s0
  $region1: #{detect_forward.4} parent=0
    #allocation3 [shape = 'u8[2048]{0}', space=smem, size = 0x800, scoped, tag = 'input window, operand 1, single buffered']
    #allocation4 [shape = 's32[1]{0}', space=sflag, size = 0x4, scoped, tag = 'scoped memory for detect_forward.4']
    %9 = vsyncpa [#allocation4], 0
    // Predicated region
    $region2: #{detect_forward.4} parent=1 // pred_check
      _
    $region3: #{detect_forward.4} parent=1 // pred_check_branch
      %11 = sbr.rel (0) target = $region5
    $region4: #{detect_forward.4} parent=1 // pred_region
      _
    $region5: #{detect_forward.4} parent=1 // pred_fallthru
      _
    // Predicated region
    $region6: #{detect_forward.4} parent=1 // pred_check
      _
    $region7: #{detect_forward.4} parent=1 // pred_check_branch
      %13 = sbr.rel (0) target = $region9
    $region8: #{detect_forward.4} parent=1 // pred_region
      %s15 = ssub.s32 64, 64
      %16 = vsyncadd [#allocation4], %s15
      %s18 = sshll.u32 %s1, 4
      %s19 = int_to_ptr.vmem [resolvable:$true] %s18
      %21 = dma.vmem_to_smem %s19, 64, [#allocation3], [#allocation4]
    $region9: #{detect_forward.4} parent=1 // pred_fallthru
      _
    // Predicated region
    $region10: #{detect_forward.4} parent=1 // pred_check
      _
    $region11: #{detect_forward.4} parent=1 // pred_check_branch
      %23 = sbr.rel (0) target = $region13
    $region12: #{detect_forward.4} parent=1 // pred_region
      _
    $region13: #{detect_forward.4} parent=1 // pred_fallthru
      _
    // Predicated region
    $region14: #{detect_forward.4} parent=1 // pred_check
      _
    $region15: #{detect_forward.4} parent=1 // pred_check_branch
      %25 = sbr.rel (0) target = $region17
    $region16: #{detect_forward.4} parent=1 // pred_region
      %26 = dma.done [#allocation4], 64
    $region17: #{detect_forward.4} parent=1 // pred_fallthru
      _
    %27 = sfence
    %v28 = vld [vmem:[%s2] sm:$0xff]
    %v29 = vld [vmem:[%s2 + $0x8] sm:$0xff]
    %v30 = vld [vmem:[%s2 + $0x10] sm:$0xff]
    %v31 = vxor.u32 %v28, 2147483648
    %v32 = vxor.u32 %v29, 2147483648
    %v33 = vxor.u32 %v30, 2147483648
    %v34 = vmul.f32 %v31, 1.442695
    %v35 = vpow.pop %v34
    %v36 = vmul.f32 %v32, 1.442695
    %v37 = vpow.pop %v36
    %v38 = vmul.f32 %v33, 1.442695
    %v39 = vpow.pop %v38
    %v40 = vadd.f32 %v35, 1.0
    %v41 = vadd.f32 %v37, 1.0
    %v42 = vadd.f32 %v39, 1.0
    %v43 = vrcp.pop %v40
    %v44 = vmul.f32 1.0, %v43
    %v45 = vrcp.pop %v41
    %v46 = vmul.f32 1.0, %v45
    %v47 = vrcp.pop %v42
    %v48 = vmul.f32 1.0, %v47
    %v49 = vmul.f32 %v44, 2.0
    %v50 = vmul.f32 %v46, 2.0
    %v51 = vmul.f32 %v48, 2.0
    %v52 = vlaneseq
    %v53 = vand.u32 %v52, 127
    %v54 = vand.u32 %v53, 15
    %v55 = vshra.s32 %v53, 4
    %v56 = vcvt.s32.f32 %v55
    %s57 = smul.u32 0, 24
    %v58 = vlaneseq
    %v59 = vshrl.u32 %v58, 7
    %v60 = vadd.s32 %v59, 8
    %v61 = vadd.s32 %v59, 16
    %v62 = vstv %s57
    %v63 = vadd.s32 %v62, %v59
    %v64 = vadd.s32 %v62, %v60
    %v65 = vadd.s32 %v62, %v61
    %v66 = vand.u32 %v63, 3
    %v67 = vand.u32 %v64, 3
    %v68 = vand.u32 %v65, 3
    %v69 = vcvt.s32.f32 %v66
    %v70 = vcvt.s32.f32 %v67
    %v71 = vcvt.s32.f32 %v68
    %v72 = vshra.s32 %v63, 2
    %v73 = vshra.s32 %v64, 2
    %v74 = vshra.s32 %v65, 2
    %v75 = vcvt.s32.f32 %v72
    %v76 = vcvt.s32.f32 %v73
    %v77 = vcvt.s32.f32 %v74
    %v78 = vrcp.pop 3.0
    %v79 = vmul.f32 %v75, %v78
    %v80 = vmul.f32 %v76, %v78
    %v81 = vmul.f32 %v77, %v78
    %v82 = vfloor.f32 %v79
    %v83 = vfloor.f32 %v80
    %v84 = vfloor.f32 %v81
    %v85 = vcvt.f32.s32.to.zero.pseudo %v82
    %v86 = vcvt.f32.s32.to.zero.pseudo %v83
    %v87 = vcvt.f32.s32.to.zero.pseudo %v84
    %v88 = vmul.u32 %v85, 3
    %v89 = vmul.u32 %v86, 3
    %v90 = vmul.u32 %v87, 3
    %v91 = vsub.s32 %v72, %v88
    %v92 = vsub.s32 %v73, %v89
    %v93 = vsub.s32 %v74, %v90
    %s94 = sld [smem:[#allocation2]]
    %s95 = sld [smem:[#allocation3 + $0x100]]
    %s96 = sld [smem:[#allocation3 + $0x101]]
    %vm97 = vcmp.eq.s32.totalorder %v91, 1
    %vm98 = vcmp.eq.s32.totalorder %v92, 1
    %vm99 = vcmp.eq.s32.totalorder %v93, 1
    %s100 = sld [smem:[#allocation3 + $0x80]]
    %v101 = vstv %s100
    %v102 = vstv %s95
    %v103 = vsel %vm97, %v101, %v102
    %v104 = vsel %vm98, %v101, %v102
    %v105 = vsel %vm99, %v101, %v102
    %s106 = sld [smem:[#allocation3 + $0x81]]
    %v107 = vstv %s106
    %v108 = vstv %s96
    %v109 = vsel %vm97, %v107, %v108
    %v110 = vsel %vm98, %v107, %v108
    %v111 = vsel %vm99, %v107, %v108
    %vm112 = vcmp.eq.s32.totalorder %v91, 0
    %vm113 = vcmp.eq.s32.totalorder %v92, 0
    %vm114 = vcmp.eq.s32.totalorder %v93, 0
    %s115 = sld [smem:[#allocation3]]
    %v116 = vstv %s115
    %v117 = vsel %vm112, %v116, %v103
    %v118 = vsel %vm113, %v116, %v104
    %v119 = vsel %vm114, %v116, %v105
    %s120 = sld [smem:[#allocation3 + $0x1]]
    %v121 = vstv %s120
    %v122 = vsel %vm112, %v121, %v109
    %v123 = vsel %vm113, %v121, %v110
    %v124 = vsel %vm114, %v121, %v111
    %vm125 = vcmp.eq.s32.totalorder %v54, 0
    %v126 = vsel %vm125, 1, 0
    %vm127 = vcmp.eq.s32.totalorder %v126, 1
    %v128 = vsel %vm127, %v56, %v69
    %v129 = vsel %vm127, %v56, %v70
    %v130 = vsel %vm127, %v56, %v71
    %v131 = vsub.f32 %v49, 0.5
    %v132 = vsub.f32 %v50, 0.5
    %v133 = vsub.f32 %v51, 0.5
    %v134 = vadd.f32 %v131, %v128
    %v135 = vadd.f32 %v132, %v129
    %v136 = vadd.f32 %v133, %v130
    %v137 = vstv %s94
    %v138 = vmul.f32 %v134, %v137
    %v139 = vmul.f32 %v135, %v137
    %v140 = vmul.f32 %v136, %v137
    %vm141 = vcmp.eq.s32.totalorder %v54, 2
    %v142 = vsel %vm141, 1, 0
    %vm143 = vcmp.eq.s32.totalorder %v142, 1
    %v144 = vsel %vm143, %v117, %v122
    %v145 = vsel %vm143, %v118, %v123
    %v146 = vsel %vm143, %v119, %v124
    %v147 = vmul.f32 %v49, %v49
    %v148 = vmul.f32 %v50, %v50
    %v149 = vmul.f32 %v51, %v51
    %v150 = vmul.f32 %v147, %v144
    %v151 = vmul.f32 %v148, %v145
    %v152 = vmul.f32 %v149, %v146
    %vm153 = vcmp.lt.s32.totalorder %v54, 2
    %vm154 = vcmp.lt.s32.totalorder %v54, 4
    %v155 = vsel %vm154, 1, 0
    %vm156 = vcmp.eq.s32.totalorder %v155, 1
    %v157 = vsel %vm156, %v150, %v44
    %v158 = vsel %vm156, %v151, %v46
    %v159 = vsel %vm156, %v152, %v48
    %v160 = vsel %vm153, 1, 0
    %vm161 = vcmp.eq.s32.totalorder %v160, 1
    %v162 = vsel %vm161, %v138, %v157
    %v163 = vsel %vm161, %v139, %v158
    %v164 = vsel %vm161, %v140, %v159
    %vm165 = vcmask 523264
    %166 = vst.msk [vmem:[%s3] sm:$0xff] %vm165, %v162
    %167 = vst.msk [vmem:[%s3 + $0x8] sm:$0xff] %vm165, %v163
    %168 = vst.msk [vmem:[%s3 + $0x10] sm:$0xff] %vm165, %v164
    // Predicated region
    $region18: #{detect_forward.4} parent=1 // pred_check
      _
    $region19: #{detect_forward.4} parent=1 // pred_check_branch
      %170 = sbr.rel (0) target = $region21
    $region20: #{detect_forward.4} parent=1 // pred_region
      _
    $region21: #{detect_forward.4} parent=1 // pred_fallthru
      _
    // Predicated region
    $region22: #{detect_forward.4} parent=1 // pred_check
      _
    $region23: #{detect_forward.4} parent=1 // pred_check_branch
      %172 = sbr.rel (0) target = $region25
    $region24: #{detect_forward.4} parent=1 // pred_region
      _
    $region25: #{detect_forward.4} parent=1 // pred_fallthru
      _
    %173 = vsyncpa [#allocation4], 1

</llo_original>
